<compile_context>
chip_gen: v5e
topology: v5e:2x2
jax: 0.10.0
libtpu: 0.0.40
codegen_flags: <defaults>
</compile_context>

<pallas_src>
import functools

import jax
import jax.numpy as jnp
from jax import lax
from jax.experimental import pallas as pl
from jax.experimental.pallas import tpu as pltpu


def _round_up(x, m):
    return ((x + m - 1) // m) * m


def _cdiv(a, b):
    return (a + b - 1) // b


def _logits_to_predicate_kernel(x_ref, w_ref, b_ref, l_ref, out_ref, acc_ref,
                                *, k_rem):
    # x_ref  : [TM, TK]  input-feature tile (batch on sublanes, features on lanes)
    # w_ref  : [C,  TK]  weight tile (torch [C_out, D] layout, lane-dense)
    # b_ref  : [C,  1]   bias (resident)
    # l_ref  : [C,  TM]  class-query labels, pre-transposed (resident over K)
    # out_ref: [1,  TM]  per-example probability of the queried class mix
    # acc_ref: [C,  TM]  f32 logits accumulator (VMEM scratch)
    k = pl.program_id(1)
    last_k = pl.num_programs(1) - 1

    x = x_ref[...]
    w = w_ref[...]
    if k_rem:
        # Tail K tile: feature columns >= k_rem were never DMA'd (stale VMEM,
        # possibly NaN/Inf) -> select them to exact zeros in BOTH operands so
        # they contribute nothing to the contraction.
        limit = jnp.where(k == last_k, k_rem, x.shape[1])
        x = jnp.where(lax.broadcasted_iota(jnp.int32, x.shape, 1) < limit, x, 0.0)
        w = jnp.where(lax.broadcasted_iota(jnp.int32, w.shape, 1) < limit, w, 0.0)

    # Partial logits with class axis on sublanes, batch on lanes: (C, TM).
    part = lax.dot_general(
        w, x,
        dimension_numbers=(((1,), (1,)), ((), ())),
        preferred_element_type=jnp.float32,
    )

    @pl.when(k == 0)
    def _():
        acc_ref[...] = part          # first K step: write directly, no zero-fill

    @pl.when(k > 0)
    def _():
        acc_ref[...] += part

    @pl.when(k == last_k)
    def _():
        logits = acc_ref[...] + b_ref[...]              # (C, TM)
        # numerically-stable softmax fused with the label-weighted readout,
        # reductions along the (tiny) class/sublane axis -> fully lane-dense.
        m = jnp.max(logits, axis=0, keepdims=True)
        e = jnp.exp(logits - m)
        num = jnp.sum(e * l_ref[...], axis=0, keepdims=True)
        den = jnp.sum(e, axis=0, keepdims=True)
        out_ref[...] = (num / den).astype(out_ref.dtype)   # lane-dense (1, TM) store


def logits_to_predicate(x_nchw, l, w, b, *, tm_max=512, tk_max=2048):
    """x_nchw: [B, C, H, W] f32, l: [B, NC] f32,
       w: [NC, D] f32 (torch Linear layout, D = C*H*W), b: [NC] f32 -> [B] f32."""
    B = x_nchw.shape[0]
    D = x_nchw.shape[1] * x_nchw.shape[2] * x_nchw.shape[3]
    C = w.shape[0]

    # No padded copy of x (dominant HBM traffic).  Transposes/reshapes of the
    # tiny l / b operands are negligible.
    x_flat = x_nchw.reshape(B, D).astype(jnp.float32)   # same as torch .view(B, -1)
    w_f = w.astype(jnp.float32)                         # (C, D), lane-dense
    l_t = l.astype(jnp.float32).T                       # (C, B): class->sublanes, batch->lanes
    b2 = b.astype(jnp.float32).reshape(C, 1)

    # Batch tile: one full-batch tile for small B (legal via the
    # "block dim == full array dim" rule, no padding, no garbage lanes);
    # otherwise a multiple of 128 (keeps l/out lane dims legal & dense), capped
    # so v7x's two TensorCores each get at least one batch tile.
    if B < 256:
        TM = B
    else:
        TM = min(tm_max, _round_up(_cdiv(B, 2), 128))
    num_m = _cdiv(B, TM)

    # Feature (K) tile: prefer a 128-multiple that divides D (no tail masking);
    # otherwise bound TK and mask the tail tile in-kernel.
    if D % 128 == 0:
        TK = 128
        for cand in range(min(D, tk_max), 0, -128):
            if D % cand == 0:
                TK = cand
                break
    else:
        TK = min(tk_max, _round_up(D, 128))
    num_k = _cdiv(D, TK)
    k_rem = D % TK

    # VMEM: double-buffered streamed tiles + resident operands (sublane/lane
    # padded), 2x headroom, bounded well under v7x's 64 MiB per-core VMEM.
    sub = _round_up(C, 8)
    vmem_est = (2 * TM * TK * 4            # x tile, double buffered
                + 2 * sub * TK * 4         # w tile, double buffered
                + 2 * sub * TM * 4         # l tile
                + 2 * 8 * TM * 4           # out tile
                + sub * TM * 4             # acc scratch
                + (1 << 20))
    vmem_limit = int(min(max(2 * vmem_est, 16 * 1024 * 1024), 40 * 1024 * 1024))

    cost = pl.CostEstimate(
        flops=2 * B * D * C,
        transcendentals=B * C,
        bytes_accessed=4 * (B * D + C * D + B * C + C + B),
    )

    kernel = functools.partial(_logits_to_predicate_kernel, k_rem=k_rem)

    out = pl.pallas_call(
        kernel,
        out_shape=jax.ShapeDtypeStruct((1, B), jnp.float32),
        grid_spec=pltpu.PrefetchScalarGridSpec(
            num_scalar_prefetch=0,
            grid=(num_m, num_k),
            in_specs=[
                pl.BlockSpec((TM, TK), lambda i, k: (i, k)),   # x : stream M and K
                pl.BlockSpec((C, TK), lambda i, k: (0, k)),    # w : stream K
                pl.BlockSpec((C, 1), lambda i, k: (0, 0)),     # b : resident
                pl.BlockSpec((C, TM), lambda i, k: (0, i)),    # l^T: resident over K
            ],
            out_specs=pl.BlockSpec((1, TM), lambda i, k: (0, i)),
            scratch_shapes=[pltpu.VMEM((C, TM), jnp.float32)],
        ),
        compiler_params=pltpu.CompilerParams(
            dimension_semantics=("parallel", "arbitrary"),
            vmem_limit_bytes=vmem_limit,
        ),
        cost_estimate=cost,
    )(x_flat, w_f, b2, l_t)
    return out[0, :]


def _reference(x_nchw, l, w, b):
    B = x_nchw.shape[0]
    x_flat = x_nchw.reshape(B, -1)
    logits = x_flat @ w.T + b
    probs = jax.nn.softmax(logits, axis=1)
    return jnp.sum(probs * l, axis=1)


if __name__ == "__main__":
    # Small shapes consistent with the module: batch=2, channels=4, spatial=16,
    # 8 classes (ODIR-style ocular disease labels).
    B, Cin, H, W = 2, 4, 16, 16
    NUM_CLASSES = 8
    D = Cin * H * W

    key = jax.random.PRNGKey(0)
    kx, kl, kw, kb = jax.random.split(key, 4)

    x = jax.random.normal(kx, (B, Cin, H, W), dtype=jnp.float32)
    # one-hot class query labels l (as in LTN predicate usage)
    label_idx = jax.random.randint(kl, (B,), 0, NUM_CLASSES)
    l = jax.nn.one_hot(label_idx, NUM_CLASSES, dtype=jnp.float32)

    # deterministic parameter init for the synthetic logits model
    # (Linear D -> NUM_CLASSES, torch [C_out, D] layout)
    w = (jax.random.normal(kw, (NUM_CLASSES, D), dtype=jnp.float32)
         * (1.0 / jnp.sqrt(D)))
    b = jax.random.normal(kb, (NUM_CLASSES,), dtype=jnp.float32) * 0.01

    out = jax.block_until_ready(logits_to_predicate(x, l, w, b))
    ref = _reference(x, l, w, b)

    assert out.shape == (B,)
    assert jnp.allclose(out, ref, atol=1e-5, rtol=1e-5), (out, ref)
    print("KERNEL_OK")
</pallas_src>

<mosaic_0001>
module attributes {stable_mosaic.version = 11 : i64} {
  func.func @_logits_to_predicate_kernel(%arg0: i32, %arg1: i32, %arg2: memref<2x1024xf32, #tpu.memory_space<vmem>>, %arg3: memref<8x1024xf32, #tpu.memory_space<vmem>>, %arg4: memref<8x1xf32, #tpu.memory_space<vmem>>, %arg5: memref<8x2xf32, #tpu.memory_space<vmem>>, %arg6: memref<1x2xf32, #tpu.memory_space<vmem>>, %arg7: memref<8x2xf32, #tpu.memory_space<vmem>>) attributes {dimension_semantics = [#tpu.dimension_semantics<parallel>, #tpu.dimension_semantics<arbitrary>], iteration_bounds = array<i64: 1, 1>, scalar_prefetch = 0 : i64, scratch_operands = 1 : i64, tpu.core_type = #tpu.core_type<tc>, window_params = [{transform_indices = @transform_0, window_bounds = array<i64: 2, 1024>}, {transform_indices = @transform_1, window_bounds = array<i64: 8, 1024>}, {pipeline_mode = #tpu.pipeline_mode<synchronous>, transform_indices = @transform_2, window_bounds = array<i64: 8, 1>}, {transform_indices = @transform_3, window_bounds = array<i64: 8, 2>}, {transform_indices = @transform_4, window_bounds = array<i64: 1, 2>}]} {
    %c0 = arith.constant 0 : index
    %c0_0 = arith.constant 0 : index
    %0 = vector.load %arg2[%c0, %c0_0] : memref<2x1024xf32, #tpu.memory_space<vmem>>, vector<2x1024xf32>
    %c0_1 = arith.constant 0 : index
    %c0_2 = arith.constant 0 : index
    %1 = vector.load %arg3[%c0_1, %c0_2] : memref<8x1024xf32, #tpu.memory_space<vmem>>, vector<8x1024xf32>
    %cst = arith.constant dense<0.000000e+00> : vector<8x2xf32>
    %2 = tpu.matmul %1, %0, %cst {dimension_numbers = #tpu.dot_dimension_numbers<[1], [1], [0], [0], [0, 0, 1, 0], [], []>} : vector<8x1024xf32>, vector<2x1024xf32>, vector<8x2xf32> -> vector<8x2xf32>
    %c0_i32 = arith.constant 0 : i32
    %3 = arith.cmpi eq, %arg1, %c0_i32 : i32
    %4 = arith.extui %3 : i1 to i32
    %c0_i32_3 = arith.constant 0 : i32
    %5 = arith.cmpi ne, %4, %c0_i32_3 : i32
    scf.if %5 {
      %c0_8 = arith.constant 0 : index
      %c0_9 = arith.constant 0 : index
      %12 = vector.load %arg7[%c0_8, %c0_9] : memref<8x2xf32, #tpu.memory_space<vmem>>, vector<8x2xf32>
      tpu.vector_store %arg7[%c0_8, %c0_9], %2 {strides = array<i32>} : memref<8x2xf32, #tpu.memory_space<vmem>>, vector<8x2xf32>,
    } else {
    }
    %c0_i32_4 = arith.constant 0 : i32
    %6 = arith.cmpi sgt, %arg1, %c0_i32_4 : i32
    %7 = arith.extui %6 : i1 to i32
    %c0_i32_5 = arith.constant 0 : i32
    %8 = arith.cmpi ne, %7, %c0_i32_5 : i32
    scf.if %8 {
      %c0_8 = arith.constant 0 : index
      %c0_9 = arith.constant 0 : index
      %12 = vector.load %arg7[%c0_8, %c0_9] : memref<8x2xf32, #tpu.memory_space<vmem>>, vector<8x2xf32>
      %13 = arith.addf %12, %2 : vector<8x2xf32>
      %c0_10 = arith.constant 0 : index
      %c0_11 = arith.constant 0 : index
      %14 = vector.load %arg7[%c0_10, %c0_11] : memref<8x2xf32, #tpu.memory_space<vmem>>, vector<8x2xf32>
      tpu.vector_store %arg7[%c0_10, %c0_11], %13 {strides = array<i32>} : memref<8x2xf32, #tpu.memory_space<vmem>>, vector<8x2xf32>,
    } else {
    }
    %c0_i32_6 = arith.constant 0 : i32
    %9 = arith.cmpi eq, %arg1, %c0_i32_6 : i32
    %10 = arith.extui %9 : i1 to i32
    %c0_i32_7 = arith.constant 0 : i32
    %11 = arith.cmpi ne, %10, %c0_i32_7 : i32
    scf.if %11 {
      %c0_8 = arith.constant 0 : index
      %c0_9 = arith.constant 0 : index
      %12 = vector.load %arg7[%c0_8, %c0_9] : memref<8x2xf32, #tpu.memory_space<vmem>>, vector<8x2xf32>
      %c0_10 = arith.constant 0 : index
      %c0_11 = arith.constant 0 : index
      %13 = vector.load %arg4[%c0_10, %c0_11] : memref<8x1xf32, #tpu.memory_space<vmem>>, vector<8x1xf32>
      %14 = vector.broadcast %13 : vector<8x1xf32> to vector<8x2xf32>
      %15 = arith.addf %12, %14 : vector<8x2xf32>
      %cst_12 = arith.constant dense<0xFF800000> : vector<2xf32>
      %16 = vector.multi_reduction <maximumf>, %15, %cst_12 [0] : vector<8x2xf32> to vector<2xf32>
      %17 = vector.shape_cast %16 : vector<2xf32> to vector<1x2xf32>
      %18 = vector.broadcast %17 : vector<1x2xf32> to vector<8x2xf32>
      %19 = arith.subf %15, %18 : vector<8x2xf32>
      %20 = math.exp %19 : vector<8x2xf32>
      %c0_13 = arith.constant 0 : index
      %c0_14 = arith.constant 0 : index
      %21 = vector.load %arg5[%c0_13, %c0_14] : memref<8x2xf32, #tpu.memory_space<vmem>>, vector<8x2xf32>
      %22 = arith.mulf %20, %21 : vector<8x2xf32>
      %cst_15 = arith.constant dense<0.000000e+00> : vector<2xf32>
      %23 = vector.multi_reduction <add>, %22, %cst_15 [0] : vector<8x2xf32> to vector<2xf32>
      %24 = vector.shape_cast %23 : vector<2xf32> to vector<1x2xf32>
      %cst_16 = arith.constant dense<0.000000e+00> : vector<2xf32>
      %25 = vector.multi_reduction <add>, %20, %cst_16 [0] : vector<8x2xf32> to vector<2xf32>
      %26 = vector.shape_cast %25 : vector<2xf32> to vector<1x2xf32>
      %27 = arith.divf %24, %26 : vector<1x2xf32>
      %c0_17 = arith.constant 0 : index
      %c0_18 = arith.constant 0 : index
      %28 = vector.load %arg6[%c0_17, %c0_18] : memref<1x2xf32, #tpu.memory_space<vmem>>, vector<1x2xf32>
      tpu.vector_store %arg6[%c0_17, %c0_18], %27 {strides = array<i32>} : memref<1x2xf32, #tpu.memory_space<vmem>>, vector<1x2xf32>,
    } else {
    }
    return
  }
  func.func @transform_0(%arg0: i32, %arg1: i32) -> (i32, i32) {
    %c0_i32 = arith.constant 0 : i32
    return %arg0, %arg1 : i32, i32
  }
  func.func @transform_1(%arg0: i32, %arg1: i32) -> (i32, i32) {
    %c0_i32 = arith.constant 0 : i32
    %c0_i32_0 = arith.constant 0 : i32
    return %c0_i32, %arg1 : i32, i32
  }
  func.func @transform_2(%arg0: i32, %arg1: i32) -> (i32, i32) {
    %c0_i32 = arith.constant 0 : i32
    %c0_i32_0 = arith.constant 0 : i32
    %c0_i32_1 = arith.constant 0 : i32
    return %c0_i32, %c0_i32_0 : i32, i32
  }
  func.func @transform_3(%arg0: i32, %arg1: i32) -> (i32, i32) {
    %c0_i32 = arith.constant 0 : i32
    %c0_i32_0 = arith.constant 0 : i32
    return %c0_i32, %arg0 : i32, i32
  }
  func.func @transform_4(%arg0: i32, %arg1: i32) -> (i32, i32) {
    %c0_i32 = arith.constant 0 : i32
    %c0_i32_0 = arith.constant 0 : i32
    return %c0_i32, %arg0 : i32, i32
  }
}

</mosaic_0001>

<llo_original>
// kernel: tpu_custom_call.1
$region0: #{tpu_custom_call.1}
  #allocation0 [shape = 'u32[]', space=smem, size = 0x4, offset = 0x4, fixed_abs, tag = 'smem constant byte address 0x4 - core index']
  #allocation1 [shape = 'u32[72,128]{1,0:T(1,128)}', space=vmem, size = 0x9000, scoped, tag = 'internal scratch']
  #allocation2 [shape = 'f32[8,2]{1,0:T(8,128)}', space=vmem, size = 0x1000, scoped, tag = 'scratch operand']
  %s0 = inlined_call_operand.vmem [shape: f32[2,1024], index: 0, kind: input, shape index: {}]
  %s1 = inlined_call_operand.hbm [shape: f32[8,1024], index: 1, kind: input, shape index: {}]
  %s2 = inlined_call_operand.vmem [shape: f32[8,1], index: 2, kind: input, shape index: {}]
  %s3 = inlined_call_operand.vmem [shape: f32[8,2], index: 3, kind: input, shape index: {}]
  %s4 = inlined_call_operand.hbm [shape: f32[1,2], index: 4, kind: output, shape index: {}]
  %s5 = sld [smem:[#allocation0]]
  $region42: #{tpu_custom_call.1} parent=0
    _
  %s7 = ssub.s32 1, %s5
  %s8 = scalar_select 0, %s7, %s5
  $region1: #{tpu_custom_call.1} parent=0
    #allocation3 [shape = 'u8[32768]{0}', space=vmem, size = 0x8000, scoped, tag = 'input window, operand 1, single buffered']
    #allocation4 [shape = 's32[1]{0}', space=sflag, size = 0x4, scoped, tag = 'scoped memory for tpu_custom_call.1']
    #allocation5 [shape = 's32[1]{0}', space=sflag, size = 0x4, scoped, tag = 'scoped memory for tpu_custom_call.1']
    #allocation6 [shape = 'u8[512]{0}', space=vmem, size = 0x400, scoped, tag = 'output window, operand 0, single buffered']
    %9 = vsyncpa [#allocation4], 0
    %10 = vsyncpa [#allocation5], 0
    // Predicated region
    $region2: #{tpu_custom_call.1} parent=1 // pred_check
      _
    $region3: #{tpu_custom_call.1} parent=1 // pred_check_branch
      %12 = sbr.rel (0) target = $region5
    $region4: #{tpu_custom_call.1} parent=1 // pred_region
      _
    $region5: #{tpu_custom_call.1} parent=1 // pred_fallthru
      _
    // Predicated region
    $region6: #{tpu_custom_call.1} parent=1 // pred_check
      _
    $region7: #{tpu_custom_call.1} parent=1 // pred_check_branch
      %14 = sbr.rel (0) target = $region9
    $region8: #{tpu_custom_call.1} parent=1 // pred_region
      %16 = vsyncadd [#allocation4], 0
      %s18 = sshll.u32 %s1, 4
      %s19 = int_to_ptr.hbm [resolvable:$true] %s18
      %s20 = sshll.u32 [#allocation3], 4
      %s21 = int_to_ptr.vmem [resolvable:$true] %s20
      %23 = dma.hbm_to_vmem [thread:$0]  %s19, 1024, %s21, [#allocation4]
    $region9: #{tpu_custom_call.1} parent=1 // pred_fallthru
      _
    // Predicated region
    $region10: #{tpu_custom_call.1} parent=1 // pred_check
      _
    $region11: #{tpu_custom_call.1} parent=1 // pred_check_branch
      %25 = sbr.rel (0) target = $region13
    $region12: #{tpu_custom_call.1} parent=1 // pred_region
      _
    $region13: #{tpu_custom_call.1} parent=1 // pred_fallthru
      _
    // Predicated region
    $region14: #{tpu_custom_call.1} parent=1 // pred_check
      _
    $region15: #{tpu_custom_call.1} parent=1 // pred_check_branch
      %27 = sbr.rel (0) target = $region17
    $region16: #{tpu_custom_call.1} parent=1 // pred_region
      _
    $region17: #{tpu_custom_call.1} parent=1 // pred_fallthru
      _
    // Predicated region
    $region18: #{tpu_custom_call.1} parent=1 // pred_check
      _
    $region19: #{tpu_custom_call.1} parent=1 // pred_check_branch
      %29 = sbr.rel (0) target = $region21
    $region20: #{tpu_custom_call.1} parent=1 // pred_region
      %31 = dma.done [#allocation4], 1024
    $region21: #{tpu_custom_call.1} parent=1 // pred_fallthru
      _
    %v32 = vld [vmem:[%s0] sm:$0xff]
    %v33 = vld [vmem:[%s0 + $0x8] sm:$0xff]
    %v34 = vld [vmem:[#allocation3] sm:$0xff]
    %v35 = vld [vmem:[#allocation3 + $0x8] sm:$0xff]
    %v36 = vld [vmem:[#allocation3 + $0x10] sm:$0xff]
    %v37 = vld [vmem:[#allocation3 + $0x18] sm:$0xff]
    %v38 = vld [vmem:[#allocation3 + $0x20] sm:$0xff]
    %v39 = vld [vmem:[#allocation3 + $0x28] sm:$0xff]
    %v40 = vld [vmem:[#allocation3 + $0x30] sm:$0xff]
    %v41 = vld [vmem:[#allocation3 + $0x38] sm:$0xff]
    %44 = vst [vmem:[#allocation1] ss:$4 sm:$0xff] %v32
    %s45 = scalar_lea.vmem [#allocation1], 32
    %46 = vst [vmem:[%s45] ss:$4 sm:$0xff] %v33
    %v47 = vld.sshfl [vmem:[#allocation1] sm:$0xff pattern:$0x73625140]
    %v48 = vld.sshfl [vmem:[#allocation1 + $0x8] sm:$0xff pattern:$0x73625140]
    %v49 = vld.sshfl [vmem:[#allocation1 + $0x10] sm:$0xff pattern:$0x73625140]
    %v50 = vld.sshfl [vmem:[#allocation1 + $0x18] sm:$0xff pattern:$0x73625140]
    %v51 = vld.sshfl [vmem:[#allocation1 + $0x20] sm:$0xff pattern:$0x73625140]
    %v52 = vld.sshfl [vmem:[#allocation1 + $0x28] sm:$0xff pattern:$0x73625140]
    %v53 = vld.sshfl [vmem:[#allocation1 + $0x30] sm:$0xff pattern:$0x73625140]
    %v54 = vld.sshfl [vmem:[#allocation1 + $0x38] sm:$0xff pattern:$0x73625140]
    %63 = vmatpush.xpose.msra.mxu0 0.0
    %64 = vmatpush.xpose.msra.mxu0 0.0
    %65 = vmatpush.xpose.msra.mxu0 0.0
    %66 = vmatpush.xpose.msra.mxu0 0.0
    %67 = vmatpush.xpose.msra.mxu0 0.0
    %68 = vmatpush.xpose.msra.mxu0 0.0
    %69 = vmatpush.xpose.msra.mxu0 0.0
    %70 = vmatpush.xpose.msra.mxu0 0.0
    %71 = vmatpush.xpose.msra.mxu0 0.0
    %72 = vmatpush.xpose.msra.mxu0 0.0
    %73 = vmatpush.xpose.msra.mxu0 0.0
    %74 = vmatpush.xpose.msra.mxu0 0.0
    %75 = vmatpush.xpose.msra.mxu0 0.0
    %76 = vmatpush.xpose.msra.mxu0 0.0
    %77 = vmatpush.xpose.msra.mxu0 0.0
    %78 = vmatpush.xpose.msra.mxu0 %v47
    %79 = vmatmul.f32.gmra.mxu0 %v34
    %v80 = vpop.f32.mrf.mxu0
    %v81 = vadd.f32 0.0, %v80
    %82 = vdwg.mxu0
    %83 = vmatpush.xpose.msra.mxu0 0.0
    %84 = vmatpush.xpose.msra.mxu0 0.0
    %85 = vmatpush.xpose.msra.mxu0 0.0
    %86 = vmatpush.xpose.msra.mxu0 0.0
    %87 = vmatpush.xpose.msra.mxu0 0.0
    %88 = vmatpush.xpose.msra.mxu0 0.0
    %89 = vmatpush.xpose.msra.mxu0 0.0
    %90 = vmatpush.xpose.msra.mxu0 0.0
    %91 = vmatpush.xpose.msra.mxu0 0.0
    %92 = vmatpush.xpose.msra.mxu0 0.0
    %93 = vmatpush.xpose.msra.mxu0 0.0
    %94 = vmatpush.xpose.msra.mxu0 0.0
    %95 = vmatpush.xpose.msra.mxu0 0.0
    %96 = vmatpush.xpose.msra.mxu0 0.0
    %97 = vmatpush.xpose.msra.mxu0 0.0
    %98 = vmatpush.xpose.msra.mxu0 %v48
    %99 = vmatmul.f32.gmra.mxu0 %v35
    %v100 = vpop.f32.mrf.mxu0
    %v101 = vadd.f32 %v81, %v100
    %102 = vdwg.mxu0
    %103 = vmatpush.xpose.msra.mxu0 0.0
    %104 = vmatpush.xpose.msra.mxu0 0.0
    %105 = vmatpush.xpose.msra.mxu0 0.0
    %106 = vmatpush.xpose.msra.mxu0 0.0
    %107 = vmatpush.xpose.msra.mxu0 0.0
    %108 = vmatpush.xpose.msra.mxu0 0.0
    %109 = vmatpush.xpose.msra.mxu0 0.0
    %110 = vmatpush.xpose.msra.mxu0 0.0
    %111 = vmatpush.xpose.msra.mxu0 0.0
    %112 = vmatpush.xpose.msra.mxu0 0.0
    %113 = vmatpush.xpose.msra.mxu0 0.0
    %114 = vmatpush.xpose.msra.mxu0 0.0
    %115 = vmatpush.xpose.msra.mxu0 0.0
    %116 = vmatpush.xpose.msra.mxu0 0.0
    %117 = vmatpush.xpose.msra.mxu0 0.0
    %118 = vmatpush.xpose.msra.mxu0 %v49
    %119 = vmatmul.f32.gmra.mxu0 %v36
    %v120 = vpop.f32.mrf.mxu0
    %v121 = vadd.f32 %v101, %v120
    %122 = vdwg.mxu0
    %123 = vmatpush.xpose.msra.mxu0 0.0
    %124 = vmatpush.xpose.msra.mxu0 0.0
    %125 = vmatpush.xpose.msra.mxu0 0.0
    %126 = vmatpush.xpose.msra.mxu0 0.0
    %127 = vmatpush.xpose.msra.mxu0 0.0
    %128 = vmatpush.xpose.msra.mxu0 0.0
    %129 = vmatpush.xpose.msra.mxu0 0.0
    %130 = vmatpush.xpose.msra.mxu0 0.0
    %131 = vmatpush.xpose.msra.mxu0 0.0
    %132 = vmatpush.xpose.msra.mxu0 0.0
    %133 = vmatpush.xpose.msra.mxu0 0.0
    %134 = vmatpush.xpose.msra.mxu0 0.0
    %135 = vmatpush.xpose.msra.mxu0 0.0
    %136 = vmatpush.xpose.msra.mxu0 0.0
    %137 = vmatpush.xpose.msra.mxu0 0.0
    %138 = vmatpush.xpose.msra.mxu0 %v50
    %139 = vmatmul.f32.gmra.mxu0 %v37
    %v140 = vpop.f32.mrf.mxu0
    %v141 = vadd.f32 %v121, %v140
    %142 = vdwg.mxu0
    %143 = vmatpush.xpose.msra.mxu0 0.0
    %144 = vmatpush.xpose.msra.mxu0 0.0
    %145 = vmatpush.xpose.msra.mxu0 0.0
    %146 = vmatpush.xpose.msra.mxu0 0.0
    %147 = vmatpush.xpose.msra.mxu0 0.0
    %148 = vmatpush.xpose.msra.mxu0 0.0
    %149 = vmatpush.xpose.msra.mxu0 0.0
    %150 = vmatpush.xpose.msra.mxu0 0.0
    %151 = vmatpush.xpose.msra.mxu0 0.0
    %152 = vmatpush.xpose.msra.mxu0 0.0
    %153 = vmatpush.xpose.msra.mxu0 0.0
    %154 = vmatpush.xpose.msra.mxu0 0.0
    %155 = vmatpush.xpose.msra.mxu0 0.0
    %156 = vmatpush.xpose.msra.mxu0 0.0
    %157 = vmatpush.xpose.msra.mxu0 0.0
    %158 = vmatpush.xpose.msra.mxu0 %v51
    %159 = vmatmul.f32.gmra.mxu0 %v38
    %v160 = vpop.f32.mrf.mxu0
    %v161 = vadd.f32 %v141, %v160
    %162 = vdwg.mxu0
    %163 = vmatpush.xpose.msra.mxu0 0.0
    %164 = vmatpush.xpose.msra.mxu0 0.0
    %165 = vmatpush.xpose.msra.mxu0 0.0
    %166 = vmatpush.xpose.msra.mxu0 0.0
    %167 = vmatpush.xpose.msra.mxu0 0.0
    %168 = vmatpush.xpose.msra.mxu0 0.0
    %169 = vmatpush.xpose.msra.mxu0 0.0
    %170 = vmatpush.xpose.msra.mxu0 0.0
    %171 = vmatpush.xpose.msra.mxu0 0.0
    %172 = vmatpush.xpose.msra.mxu0 0.0
    %173 = vmatpush.xpose.msra.mxu0 0.0
    %174 = vmatpush.xpose.msra.mxu0 0.0
    %175 = vmatpush.xpose.msra.mxu0 0.0
    %176 = vmatpush.xpose.msra.mxu0 0.0
    %177 = vmatpush.xpose.msra.mxu0 0.0
    %178 = vmatpush.xpose.msra.mxu0 %v52
    %179 = vmatmul.f32.gmra.mxu0 %v39
    %v180 = vpop.f32.mrf.mxu0
    %v181 = vadd.f32 %v161, %v180
    %182 = vdwg.mxu0
    %183 = vmatpush.xpose.msra.mxu0 0.0
    %184 = vmatpush.xpose.msra.mxu0 0.0
    %185 = vmatpush.xpose.msra.mxu0 0.0
    %186 = vmatpush.xpose.msra.mxu0 0.0
    %187 = vmatpush.xpose.msra.mxu0 0.0
    %188 = vmatpush.xpose.msra.mxu0 0.0
    %189 = vmatpush.xpose.msra.mxu0 0.0
    %190 = vmatpush.xpose.msra.mxu0 0.0
    %191 = vmatpush.xpose.msra.mxu0 0.0
    %192 = vmatpush.xpose.msra.mxu0 0.0
    %193 = vmatpush.xpose.msra.mxu0 0.0
    %194 = vmatpush.xpose.msra.mxu0 0.0
    %195 = vmatpush.xpose.msra.mxu0 0.0
    %196 = vmatpush.xpose.msra.mxu0 0.0
    %197 = vmatpush.xpose.msra.mxu0 0.0
    %198 = vmatpush.xpose.msra.mxu0 %v53
    %199 = vmatmul.f32.gmra.mxu0 %v40
    %v200 = vpop.f32.mrf.mxu0
    %v201 = vadd.f32 %v181, %v200
    %202 = vdwg.mxu0
    %203 = vmatpush.xpose.msra.mxu0 0.0
    %204 = vmatpush.xpose.msra.mxu0 0.0
    %205 = vmatpush.xpose.msra.mxu0 0.0
    %206 = vmatpush.xpose.msra.mxu0 0.0
    %207 = vmatpush.xpose.msra.mxu0 0.0
    %208 = vmatpush.xpose.msra.mxu0 0.0
    %209 = vmatpush.xpose.msra.mxu0 0.0
    %210 = vmatpush.xpose.msra.mxu0 0.0
    %211 = vmatpush.xpose.msra.mxu0 0.0
    %212 = vmatpush.xpose.msra.mxu0 0.0
    %213 = vmatpush.xpose.msra.mxu0 0.0
    %214 = vmatpush.xpose.msra.mxu0 0.0
    %215 = vmatpush.xpose.msra.mxu0 0.0
    %216 = vmatpush.xpose.msra.mxu0 0.0
    %217 = vmatpush.xpose.msra.mxu0 0.0
    %218 = vmatpush.xpose.msra.mxu0 %v54
    %219 = vmatmul.f32.gmra.mxu0 %v41
    %v220 = vpop.f32.mrf.mxu0
    %v221 = vadd.f32 %v201, %v220
    %222 = vdwg.mxu0
    %p223 = scmp.eq.s32.totalorder 0, 0
    // Predicated region
    $region22: #{tpu_custom_call.1} parent=1 // pred_check
      %p224 = pneg %p223
    $region23: #{tpu_custom_call.1} parent=1 // pred_check_branch
      %226 = sbr.rel (%p224) target = $region25
    $region24: #{tpu_custom_call.1} parent=1 // pred_region
      %vm227 = vcmask 15360
      %228 = vst.msk [vmem:[#allocation2] sm:$0xff] %vm227, %v221
    $region25: #{tpu_custom_call.1} parent=1 // pred_fallthru
      _
    %p229 = scmp.gt.s32.totalorder 0, 0
    // Predicated region
    $region26: #{tpu_custom_call.1} parent=1 // pred_check
      %p230 = pneg %p229
    $region27: #{tpu_custom_call.1} parent=1 // pred_check_branch
      %232 = sbr.rel (%p230) target = $region29
    $region28: #{tpu_custom_call.1} parent=1 // pred_region
      %v233 = vld [vmem:[#allocation2] sm:$0xff]
      %v234 = vadd.f32 %v233, %v221
      %vm235 = vcmask 15360
      %236 = vst.msk [vmem:[#allocation2] sm:$0xff] %vm235, %v234
    $region29: #{tpu_custom_call.1} parent=1 // pred_fallthru
      _
    // Predicated region
    $region30: #{tpu_custom_call.1} parent=1 // pred_check
      %p237 = pneg %p223
    $region31: #{tpu_custom_call.1} parent=1 // pred_check_branch
      %239 = sbr.rel (%p237) target = $region33
    $region32: #{tpu_custom_call.1} parent=1 // pred_region
      %v240 = vld [vmem:[#allocation2] sm:$0xff]
      %v241 = vld [vmem:[%s2] sm:$0xff]
      %243 = vset.pattern.permute.xlu0 0
      %244 = vperm.xlu0 %243, %v241
      %v245 = vpop.permute.xlu0 %244
      %v247 = vadd.f32 %v240, %v245
      %vm248 = vcmask 15360
      %v249 = vsel %vm248, %v247, -inf
      %v250 = vrot.slane %v249, 4
      %v251 = vmax.f32 %v249, %v250
      %v252 = vrot.slane %v251, 2
      %v253 = vmax.f32 %v251, %v252
      %v254 = vrot.slane %v253, 1
      %v255 = vmax.f32 %v253, %v254
      %v256 = vsub.f32 %v247, %v255
      %v257 = vmul.f32 %v256, 1.442695
      %v258 = vpow.pop %v257
      %v259 = vld [vmem:[%s3] sm:$0xff]
      %v260 = vmul.f32 %v258, %v259
      %v261 = vsel %vm248, %v260, 0.0
      %v262 = vrot.slane %v261, 4
      %v263 = vadd.f32 %v261, %v262
      %v264 = vrot.slane %v263, 2
      %v265 = vadd.f32 %v263, %v264
      %v266 = vrot.slane %v265, 1
      %v267 = vadd.f32 %v265, %v266
      %v268 = vsel %vm248, %v258, 0.0
      %v269 = vrot.slane %v268, 4
      %v270 = vadd.f32 %v268, %v269
      %v271 = vrot.slane %v270, 2
      %v272 = vadd.f32 %v270, %v271
      %v273 = vrot.slane %v272, 1
      %v274 = vadd.f32 %v272, %v273
      %v275 = vrcp.pop %v274
      %v276 = vmul.f32 %v274, %v275
      %v277 = vsub.f32 1.0, %v276
      %v278 = vmul.f32 %v275, %v277
      %v279 = vadd.f32 %v275, %v278
      %vm280 = vweird.f32 %v274
      %vm281 = vweird.f32 %v275
      %vm282 = vmor %vm280, %vm281
      %v283 = vsel %vm282, %v275, %v279
      %v284 = vand.u32 2147483647, %v274
      %vm285 = vcmp.eq.f32.partialorder %v284, 8.507059e+37
      %v286 = vand.u32 %v274, 2147483648
      %v287 = vor.u32 1.1754944e-38, %v286
      %v288 = vsel %vm285, %v287, %v283
      %v289 = vmul.f32 %v267, %v288
      %vm290 = vcmask 8192
      %291 = vst.msk [vmem:[#allocation6] sm:$0x1] %vm290, %v289
    $region33: #{tpu_custom_call.1} parent=1 // pred_fallthru
      _
    // Predicated region
    $region34: #{tpu_custom_call.1} parent=1 // pred_check
      _
    $region35: #{tpu_custom_call.1} parent=1 // pred_check_branch
      %293 = sbr.rel (0) target = $region37
    $region36: #{tpu_custom_call.1} parent=1 // pred_region
      %295 = vsyncadd [#allocation5], 0
      %s297 = sshll.u32 [#allocation6], 4
      %s298 = int_to_ptr.vmem [resolvable:$true] %s297
      %s299 = sshll.u32 %s4, 4
      %s300 = int_to_ptr.hbm [resolvable:$true] %s299
      %302 = dma.vmem_to_hbm [thread:$0]  %s298, 16, %s300, [#allocation5]
    $region37: #{tpu_custom_call.1} parent=1 // pred_fallthru
      _
    // Predicated region
    $region38: #{tpu_custom_call.1} parent=1 // pred_check
      _
    $region39: #{tpu_custom_call.1} parent=1 // pred_check_branch
      %304 = sbr.rel (0) target = $region41
    $region40: #{tpu_custom_call.1} parent=1 // pred_region
      %306 = dma.done [#allocation5], 16
    $region41: #{tpu_custom_call.1} parent=1 // pred_fallthru
      _
    %307 = vsyncpa [#allocation4], 1
    %308 = vsyncpa [#allocation5], 1

</llo_original>
